<compile_context>
chip_gen: v5e
topology: v5e:2x2
jax: 0.10.0
libtpu: 0.0.40
codegen_flags: <defaults>
</compile_context>

<pallas_src>
import math

import jax
import jax.numpy as jnp
from jax.experimental import pallas as pl
from jax.experimental.pallas import tpu as pltpu

LOG2E = 1.4426950408889634  # np.log2(np.exp(1)) -- matches the torch reference

H1, H2 = 256, 128           # hidden widths of the MINE critic


def _elu(x):
    # ELU(alpha=1): x if x > 0 else exp(x) - 1   (min() avoids exp overflow)
    return jnp.where(x > 0, x, jnp.exp(jnp.minimum(x, 0.0)) - 1.0)


def mine_tile_kernel(xj_ref, xm_ref, w1_ref, b1_ref, w2_ref, b2_ref, w3_ref,
                     out_ref):
    """One row tile of the MINE critic; emits per-tile partial reductions."""
    T = xj_ref.shape[0]

    xj = xj_ref[...]                      # (T, D_in) bf16  [z | s]
    xm = xm_ref[...]                      # (T, D_in) bf16  [z | shuffled s]
    if T % 16 == 0:
        # Sublane concat: joint rows on top, marginal rows below -> (2T, D_in)
        x_both = jnp.concatenate([xj, xm], axis=0)
    else:
        # Tiny ragged tiles (T not a multiple of the bf16 sublane packing):
        # route the concat through f32 so the offset stays tile-aligned.
        x_both = jnp.concatenate(
            [xj.astype(jnp.float32), xm.astype(jnp.float32)],
            axis=0).astype(xj.dtype)

    # ---- layers 1 & 2: one fused (2T, .) matmul per layer, f32 accum ----
    h1 = _elu(jnp.dot(x_both, w1_ref[...],
                      preferred_element_type=jnp.float32) + b1_ref[...])
    h2 = _elu(jnp.dot(h1.astype(w2_ref.dtype), w2_ref[...],
                      preferred_element_type=jnp.float32) + b2_ref[...])

    # ---- head: N=1 matmul replaced by VPU multiply + lane reduction.
    # b3 is omitted: it cancels exactly in mean(joint) - log(mean(exp(marg))).
    logits = jnp.sum(h2 * w3_ref[...], axis=-1, keepdims=True)     # (2T, 1)
    logit_joint = logits[:T]
    logit_marg = logits[T:]

    # ---- per-tile partials (max-shifted log-sum-exp pieces) ----
    sum_joint = jnp.sum(logit_joint)
    m_tile = jnp.max(logit_marg)
    e_tile = jnp.sum(jnp.exp(logit_marg - m_tile))

    lane = jax.lax.broadcasted_iota(jnp.int32, (8, 128), 1)
    vals = jnp.where(lane == 0, sum_joint,
                     jnp.where(lane == 1, m_tile,
                               jnp.where(lane == 2, e_tile, 0.0)))
    out_ref[0] = vals.astype(jnp.float32)


def _tpu_generation():
    try:
        kind = jax.devices()[0].device_kind.lower()
    except Exception:  # pragma: no cover - non-TPU / interpret fallbacks
        return "unknown"
    if "v7" in kind:
        return "v7x"
    if "v6" in kind:
        return "v6e"
    if "v5 lite" in kind or "v5e" in kind or "v5litepod" in kind:
        return "v5e"
    return "other"


def _pick_tile(batch, gen):
    """Generation-aware row tile: divides the batch, multiple of 16 when possible."""
    if gen == "v5e":
        # Single vector-store slot + no bf16 VPU: keep f32 intermediates small.
        candidates = (1024, 512, 256, 128, 64, 32, 16)
    else:
        candidates = (2048, 1024, 512, 256, 128, 64, 32, 16)
    divisors = [t for t in candidates if batch % t == 0]
    if not divisors:
        return batch
    if gen == "v7x":
        # Two TensorCores per chip: prefer an even tile count so both get work.
        for t in divisors:
            if (batch // t) % 2 == 0:
                return t
    return divisors[0]


def _vmem_limit(T, d_in, gen):
    """Explicit scoped-VMEM budget from the per-tile footprint (with headroom)."""
    cap = (48 << 20) if gen == "v7x" else (100 << 20)
    need = (2 * 2 * T * d_in * 2                                   # xj/xm, double-buffered bf16
            + 2 * ((d_in * H1 + H1 * H2) * 2 + (H1 + 2 * H2) * 4)  # weights (2x slack)
            + 2 * (2 * T) * (d_in + H1 + H2) * 4                   # f32 intermediates (2x slack)
            + 2 * 8 * 128 * 4                                      # output block
            + (4 << 20))                                           # fixed headroom
    return int(min(cap, max(need, 16 << 20)))


def _nbytes(a):
    return math.prod(a.shape) * jnp.dtype(a.dtype).itemsize


def mine_loss_pallas(x_joint, x_marg, w1, b1, w2, b2, w3):
    """x_joint/x_marg: (B, latent+s_dim) bf16 critic inputs. Returns scalar loss."""
    B, d_in = x_joint.shape
    gen = _tpu_generation()
    T = _pick_tile(B, gen)
    num_tiles = B // T

    const = dict(pipeline_mode=pl.Buffered(1))   # grid-invariant blocks: single-buffer
    in_specs = [
        pl.BlockSpec((T, d_in), lambda i: (i, 0)),           # joint rows tile
        pl.BlockSpec((T, d_in), lambda i: (i, 0)),           # marginal rows tile
        pl.BlockSpec((d_in, H1), lambda i: (0, 0), **const),  # W1 (unsplit)
        pl.BlockSpec((1, H1), lambda i: (0, 0), **const),     # b1
        pl.BlockSpec((H1, H2), lambda i: (0, 0), **const),    # W2
        pl.BlockSpec((1, H2), lambda i: (0, 0), **const),     # b2
        pl.BlockSpec((1, H2), lambda i: (0, 0), **const),     # w3 (VPU row)
    ]
    out_specs = pl.BlockSpec((1, 8, 128), lambda i: (i, 0, 0))

    flops = (2 * (2 * B) * d_in * H1        # fused layer-1 matmul
             + 2 * (2 * B) * H1 * H2        # fused layer-2 matmul
             + 4 * (2 * B) * H2)            # VPU head
    transcendentals = (2 * B) * (H1 + H2) + B
    bytes_accessed = (sum(_nbytes(a) for a in
                          (x_joint, x_marg, w1, b1, w2, b2, w3))
                      + num_tiles * 8 * 128 * 4)

    partials = pl.pallas_call(
        mine_tile_kernel,
        out_shape=jax.ShapeDtypeStruct((num_tiles, 8, 128), jnp.float32),
        grid=(num_tiles,),
        in_specs=in_specs,
        out_specs=out_specs,
        compiler_params=pltpu.CompilerParams(
            dimension_semantics=("parallel",),
            vmem_limit_bytes=_vmem_limit(T, d_in, gen)),
        cost_estimate=pl.CostEstimate(flops=flops,
                                      transcendentals=transcendentals,
                                      bytes_accessed=bytes_accessed),
    )(x_joint, x_marg, w1, b1, w2, b2, w3)

    # Tiny final reduction over per-tile partials (stabilized LSE).
    sum_joint = jnp.sum(partials[:, 0, 0])
    m_t = partials[:, 0, 1]
    e_t = partials[:, 0, 2]
    m_glob = jnp.max(m_t)
    sum_exp = jnp.sum(e_t * jnp.exp(m_t - m_glob))
    mean_joint = sum_joint / B
    log_mean_exp = m_glob + jnp.log(sum_exp / B)
    return -LOG2E * (mean_joint - log_mean_exp)


def init_params(key, latent_dim, s_dim):
    """nn.Linear-style init: U(-1/sqrt(fan_in), 1/sqrt(fan_in))."""
    dims = [(latent_dim + s_dim, H1), (H1, H2), (H2, 1)]
    raw = []
    for i, (fan_in, fan_out) in enumerate(dims):
        kw, kb = jax.random.split(jax.random.fold_in(key, i))
        bound = 1.0 / math.sqrt(fan_in)
        w = jax.random.uniform(kw, (fan_in, fan_out), jnp.float32,
                               minval=-bound, maxval=bound)
        b = jax.random.uniform(kb, (1, fan_out), jnp.float32,
                               minval=-bound, maxval=bound)
        raw.append((w, b))
    (w1, b1), (w2, b2), (w3, b3) = raw
    return [w1.astype(jnp.bfloat16),                 # (latent+s_dim, 256)
            b1,                                      # (1, 256) f32
            w2.astype(jnp.bfloat16),                 # (256, 128)
            b2,                                      # (1, 128) f32
            w3.reshape(1, H2).astype(jnp.float32),   # head row, keep f32
            b3]                                      # (1, 1) f32 (cancels in loss)


@jax.jit
def mine_forward(z, s, perm_key, w1, b1, w2, b2, w3, b3):
    """Replicates MineNet.forward (torch.randperm -> keyed permutation)."""
    del b3  # cancels exactly in mean(joint) - log(mean(exp(marginal)))
    batch = z.shape[0]
    idx = jax.random.permutation(perm_key, batch)
    zb = z.astype(jnp.bfloat16)
    sb = s.astype(jnp.bfloat16)
    s_shuf = jnp.take(sb, idx, axis=0)               # wrapper-side gather (tiny)
    x_joint = jnp.concatenate([zb, sb], axis=1)       # (B, latent+s_dim)
    x_marg = jnp.concatenate([zb, s_shuf], axis=1)    # (B, latent+s_dim)
    return mine_loss_pallas(x_joint, x_marg, w1, b1, w2, b2, w3)


def mine_reference(z, s, idx, w1, b1, w2, b2, w3, b3):
    """Pure-JAX reference (same bf16 weights/inputs, f32 math) for sanity check."""
    zf = z.astype(jnp.float32)
    sf = s.astype(jnp.float32)
    w1f = w1.astype(jnp.float32)
    w2f = w2.astype(jnp.float32)

    def critic(s_part):
        h1 = _elu(jnp.concatenate([zf, s_part], axis=1) @ w1f + b1)
        h2 = _elu(h1 @ w2f + b2)
        return jnp.sum(h2 * w3, axis=-1, keepdims=True) + b3[0, 0]

    lj = critic(sf)
    lm = critic(sf[idx])
    return -LOG2E * (jnp.mean(lj) - jnp.log(jnp.mean(jnp.exp(lm))))


if __name__ == "__main__":
    batch, latent_dim, s_dim = 64, 16, 16

    key = jax.random.PRNGKey(0)
    kz, ks, kperm, kparams = jax.random.split(key, 4)

    z = jax.random.normal(kz, (batch, latent_dim), jnp.float32)
    s = jax.random.normal(ks, (batch, s_dim), jnp.float32)
    params = init_params(kparams, latent_dim, s_dim)

    loss = jax.block_until_ready(mine_forward(z, s, kperm, *params))

    idx = jax.random.permutation(kperm, batch)
    ref = mine_reference(z.astype(jnp.bfloat16), s.astype(jnp.bfloat16),
                         idx, *params)

    assert loss.shape == () and bool(jnp.isfinite(loss))
    assert abs(float(loss) - float(ref)) < 1e-2 + 1e-2 * abs(float(ref))
    print("KERNEL_OK")
</pallas_src>

<mosaic_0001>
module attributes {stable_mosaic.version = 11 : i64} {
  func.func @mine_tile_kernel(%arg0: i32, %arg1: memref<64x32xbf16, #tpu.memory_space<vmem>>, %arg2: memref<64x32xbf16, #tpu.memory_space<vmem>>, %arg3: memref<32x256xbf16, #tpu.memory_space<vmem>>, %arg4: memref<1x256xf32, #tpu.memory_space<vmem>>, %arg5: memref<256x128xbf16, #tpu.memory_space<vmem>>, %arg6: memref<1x128xf32, #tpu.memory_space<vmem>>, %arg7: memref<1x128xf32, #tpu.memory_space<vmem>>, %arg8: memref<1x8x128xf32, #tpu.memory_space<vmem>>) attributes {dimension_semantics = [#tpu.dimension_semantics<parallel>], iteration_bounds = array<i64: 1>, scalar_prefetch = 0 : i64, scratch_operands = 0 : i64, tpu.core_type = #tpu.core_type<tc>, window_params = [{transform_indices = @transform_0, window_bounds = array<i64: 64, 32>}, {transform_indices = @transform_1, window_bounds = array<i64: 64, 32>}, {pipeline_mode = #tpu.pipeline_mode<synchronous>, transform_indices = @transform_2, window_bounds = array<i64: 32, 256>}, {pipeline_mode = #tpu.pipeline_mode<synchronous>, transform_indices = @transform_3, window_bounds = array<i64: 1, 256>}, {pipeline_mode = #tpu.pipeline_mode<synchronous>, transform_indices = @transform_4, window_bounds = array<i64: 256, 128>}, {pipeline_mode = #tpu.pipeline_mode<synchronous>, transform_indices = @transform_5, window_bounds = array<i64: 1, 128>}, {pipeline_mode = #tpu.pipeline_mode<synchronous>, transform_indices = @transform_6, window_bounds = array<i64: 1, 128>}, {transform_indices = @transform_7, window_bounds = array<i64: 1, 8, 128>}]} {
    %c0 = arith.constant 0 : index
    %c0_0 = arith.constant 0 : index
    %0 = vector.load %arg1[%c0, %c0_0] : memref<64x32xbf16, #tpu.memory_space<vmem>>, vector<64x32xbf16>
    %c0_1 = arith.constant 0 : index
    %c0_2 = arith.constant 0 : index
    %1 = vector.load %arg2[%c0_1, %c0_2] : memref<64x32xbf16, #tpu.memory_space<vmem>>, vector<64x32xbf16>
    %2 = tpu.concatenate %0, %1 in 0 : vector<64x32xbf16>, vector<64x32xbf16> -> vector<128x32xbf16>
    %c0_3 = arith.constant 0 : index
    %c0_4 = arith.constant 0 : index
    %3 = vector.load %arg3[%c0_3, %c0_4] : memref<32x256xbf16, #tpu.memory_space<vmem>>, vector<32x256xbf16>
    %cst = arith.constant dense<0.000000e+00> : vector<128x256xf32>
    %4 = tpu.matmul %2, %3, %cst {dimension_numbers = #tpu.dot_dimension_numbers<[1], [0], [0], [1], [0, 0, 1, 1], [], []>} : vector<128x32xbf16>, vector<32x256xbf16>, vector<128x256xf32> -> vector<128x256xf32>
    %c0_5 = arith.constant 0 : index
    %c0_6 = arith.constant 0 : index
    %5 = vector.load %arg4[%c0_5, %c0_6] : memref<1x256xf32, #tpu.memory_space<vmem>>, vector<1x256xf32>
    %6 = vector.broadcast %5 : vector<1x256xf32> to vector<128x256xf32>
    %7 = arith.addf %4, %6 : vector<128x256xf32>
    %cst_7 = arith.constant 0.000000e+00 : f32
    %8 = vector.broadcast %cst_7 : f32 to vector<128x256xf32>
    %9 = arith.cmpf ogt, %7, %8 : vector<128x256xf32>
    %cst_8 = arith.constant 0.000000e+00 : f32
    %10 = vector.broadcast %cst_8 : f32 to vector<128x256xf32>
    %11 = arith.minimumf %7, %10 : vector<128x256xf32>
    %12 = math.exp %11 : vector<128x256xf32>
    %cst_9 = arith.constant 1.000000e+00 : f32
    %13 = vector.broadcast %cst_9 : f32 to vector<128x256xf32>
    %14 = arith.subf %12, %13 : vector<128x256xf32>
    %15 = arith.select %9, %7, %14 : vector<128x256xi1>, vector<128x256xf32>
    %16 = arith.truncf %15 : vector<128x256xf32> to vector<128x256xbf16>
    %c0_10 = arith.constant 0 : index
    %c0_11 = arith.constant 0 : index
    %17 = vector.load %arg5[%c0_10, %c0_11] : memref<256x128xbf16, #tpu.memory_space<vmem>>, vector<256x128xbf16>
    %cst_12 = arith.constant dense<0.000000e+00> : vector<128x128xf32>
    %18 = tpu.matmul %16, %17, %cst_12 {dimension_numbers = #tpu.dot_dimension_numbers<[1], [0], [0], [1], [0, 0, 1, 1], [], []>} : vector<128x256xbf16>, vector<256x128xbf16>, vector<128x128xf32> -> vector<128x128xf32>
    %c0_13 = arith.constant 0 : index
    %c0_14 = arith.constant 0 : index
    %19 = vector.load %arg6[%c0_13, %c0_14] : memref<1x128xf32, #tpu.memory_space<vmem>>, vector<1x128xf32>
    %20 = vector.broadcast %19 : vector<1x128xf32> to vector<128x128xf32>
    %21 = arith.addf %18, %20 : vector<128x128xf32>
    %cst_15 = arith.constant 0.000000e+00 : f32
    %22 = vector.broadcast %cst_15 : f32 to vector<128x128xf32>
    %23 = arith.cmpf ogt, %21, %22 : vector<128x128xf32>
    %cst_16 = arith.constant 0.000000e+00 : f32
    %24 = vector.broadcast %cst_16 : f32 to vector<128x128xf32>
    %25 = arith.minimumf %21, %24 : vector<128x128xf32>
    %26 = math.exp %25 : vector<128x128xf32>
    %cst_17 = arith.constant 1.000000e+00 : f32
    %27 = vector.broadcast %cst_17 : f32 to vector<128x128xf32>
    %28 = arith.subf %26, %27 : vector<128x128xf32>
    %29 = arith.select %23, %21, %28 : vector<128x128xi1>, vector<128x128xf32>
    %c0_18 = arith.constant 0 : index
    %c0_19 = arith.constant 0 : index
    %30 = vector.load %arg7[%c0_18, %c0_19] : memref<1x128xf32, #tpu.memory_space<vmem>>, vector<1x128xf32>
    %31 = vector.broadcast %30 : vector<1x128xf32> to vector<128x128xf32>
    %32 = arith.mulf %29, %31 : vector<128x128xf32>
    %cst_20 = arith.constant dense<0.000000e+00> : vector<128xf32>
    %33 = vector.multi_reduction <add>, %32, %cst_20 [1] : vector<128x128xf32> to vector<128xf32>
    %34 = vector.shape_cast %33 : vector<128xf32> to vector<128x1xf32>
    %35 = vector.extract_strided_slice %34 {offsets = [0, 0], sizes = [64, 1], strides = [1, 1]} : vector<128x1xf32> to vector<64x1xf32>
    %36 = vector.extract_strided_slice %34 {offsets = [64, 0], sizes = [64, 1], strides = [1, 1]} : vector<128x1xf32> to vector<64x1xf32>
    %37 = vector.shape_cast %35 : vector<64x1xf32> to vector<1x64x1xf32>
    %cst_21 = arith.constant dense<0.000000e+00> : vector<1xf32>
    %38 = vector.multi_reduction <add>, %37, %cst_21 [1, 2] : vector<1x64x1xf32> to vector<1xf32>
    %39 = vector.shape_cast %38 : vector<1xf32> to vector<1x1x1xf32>
    %40 = vector.extract %39[0, 0, 0] : f32 from vector<1x1x1xf32>
    %41 = vector.shape_cast %36 : vector<64x1xf32> to vector<1x64x1xf32>
    %cst_22 = arith.constant dense<0xFF800000> : vector<1xf32>
    %42 = vector.multi_reduction <maximumf>, %41, %cst_22 [1, 2] : vector<1x64x1xf32> to vector<1xf32>
    %43 = vector.shape_cast %42 : vector<1xf32> to vector<1x1x1xf32>
    %44 = vector.extract %43[0, 0, 0] : f32 from vector<1x1x1xf32>
    %45 = vector.broadcast %44 : f32 to vector<64x1xf32>
    %46 = arith.subf %36, %45 : vector<64x1xf32>
    %47 = math.exp %46 : vector<64x1xf32>
    %48 = vector.shape_cast %47 : vector<64x1xf32> to vector<1x64x1xf32>
    %cst_23 = arith.constant dense<0.000000e+00> : vector<1xf32>
    %49 = vector.multi_reduction <add>, %48, %cst_23 [1, 2] : vector<1x64x1xf32> to vector<1xf32>
    %50 = vector.shape_cast %49 : vector<1xf32> to vector<1x1x1xf32>
    %51 = vector.extract %50[0, 0, 0] : f32 from vector<1x1x1xf32>
    %52 = tpu.iota {dimensions = array<i32: 1>} : vector<8x128xi32>
    %c0_i32 = arith.constant 0 : i32
    %53 = vector.broadcast %c0_i32 : i32 to vector<8x128xi32>
    %54 = arith.cmpi eq, %52, %53 : vector<8x128xi32>
    %c1_i32 = arith.constant 1 : i32
    %55 = vector.broadcast %c1_i32 : i32 to vector<8x128xi32>
    %56 = arith.cmpi eq, %52, %55 : vector<8x128xi32>
    %c2_i32 = arith.constant 2 : i32
    %57 = vector.broadcast %c2_i32 : i32 to vector<8x128xi32>
    %58 = arith.cmpi eq, %52, %57 : vector<8x128xi32>
    %cst_24 = arith.constant 0.000000e+00 : f32
    %59 = vector.broadcast %51 : f32 to vector<8x128xf32>
    %60 = vector.broadcast %cst_24 : f32 to vector<8x128xf32>
    %61 = arith.select %58, %59, %60 : vector<8x128xi1>, vector<8x128xf32>
    %62 = vector.broadcast %44 : f32 to vector<8x128xf32>
    %63 = arith.select %56, %62, %61 : vector<8x128xi1>, vector<8x128xf32>
    %64 = vector.broadcast %40 : f32 to vector<8x128xf32>
    %65 = arith.select %54, %64, %63 : vector<8x128xi1>, vector<8x128xf32>
    %c0_25 = arith.constant 0 : index
    %c0_26 = arith.constant 0 : index
    %c0_27 = arith.constant 0 : index
    %66 = vector.load %arg8[%c0_25, %c0_26, %c0_27] : memref<1x8x128xf32, #tpu.memory_space<vmem>>, vector<1x8x128xf32>
    %67 = vector.shape_cast %66 : vector<1x8x128xf32> to vector<8x128xf32>
    %68 = vector.shape_cast %65 : vector<8x128xf32> to vector<1x8x128xf32>
    tpu.vector_store %arg8[%c0_25, %c0_26, %c0_27], %68 {strides = array<i32>} : memref<1x8x128xf32, #tpu.memory_space<vmem>>, vector<1x8x128xf32>,
    return
  }
  func.func @transform_0(%arg0: i32) -> (i32, i32) {
    %c0_i32 = arith.constant 0 : i32
    %c0_i32_0 = arith.constant 0 : i32
    return %arg0, %c0_i32 : i32, i32
  }
  func.func @transform_1(%arg0: i32) -> (i32, i32) {
    %c0_i32 = arith.constant 0 : i32
    %c0_i32_0 = arith.constant 0 : i32
    return %arg0, %c0_i32 : i32, i32
  }
  func.func @transform_2(%arg0: i32) -> (i32, i32) {
    %c0_i32 = arith.constant 0 : i32
    %c0_i32_0 = arith.constant 0 : i32
    %c0_i32_1 = arith.constant 0 : i32
    return %c0_i32, %c0_i32_0 : i32, i32
  }
  func.func @transform_3(%arg0: i32) -> (i32, i32) {
    %c0_i32 = arith.constant 0 : i32
    %c0_i32_0 = arith.constant 0 : i32
    %c0_i32_1 = arith.constant 0 : i32
    return %c0_i32, %c0_i32_0 : i32, i32
  }
  func.func @transform_4(%arg0: i32) -> (i32, i32) {
    %c0_i32 = arith.constant 0 : i32
    %c0_i32_0 = arith.constant 0 : i32
    %c0_i32_1 = arith.constant 0 : i32
    return %c0_i32, %c0_i32_0 : i32, i32
  }
  func.func @transform_5(%arg0: i32) -> (i32, i32) {
    %c0_i32 = arith.constant 0 : i32
    %c0_i32_0 = arith.constant 0 : i32
    %c0_i32_1 = arith.constant 0 : i32
    return %c0_i32, %c0_i32_0 : i32, i32
  }
  func.func @transform_6(%arg0: i32) -> (i32, i32) {
    %c0_i32 = arith.constant 0 : i32
    %c0_i32_0 = arith.constant 0 : i32
    %c0_i32_1 = arith.constant 0 : i32
    return %c0_i32, %c0_i32_0 : i32, i32
  }
  func.func @transform_7(%arg0: i32) -> (i32, i32, i32) {
    %c0_i32 = arith.constant 0 : i32
    %c0_i32_0 = arith.constant 0 : i32
    %c0_i32_1 = arith.constant 0 : i32
    return %arg0, %c0_i32, %c0_i32_0 : i32, i32, i32
  }
}

</mosaic_0001>

<llo_original>
// kernel: mine_forward.1
$region0: #{mine_forward.1}
  #allocation0 [shape = 'u32[]', space=smem, size = 0x4, offset = 0x4, fixed_abs, tag = 'smem constant byte address 0x4 - core index']
  #allocation1 [shape = 'u32[72,128]{1,0:T(1,128)}', space=vmem, size = 0x9000, scoped, tag = 'internal scratch']
  %s0 = inlined_call_operand.vmem [shape: bf16[64,32], index: 0, kind: input, shape index: {}]
  %s1 = inlined_call_operand.vmem [shape: bf16[64,32], index: 1, kind: input, shape index: {}]
  %s2 = inlined_call_operand.vmem [shape: bf16[32,256], index: 2, kind: input, shape index: {}]
  %s3 = inlined_call_operand.vmem [shape: f32[1,256], index: 3, kind: input, shape index: {}]
  %s4 = inlined_call_operand.vmem [shape: bf16[256,128], index: 4, kind: input, shape index: {}]
  %s5 = inlined_call_operand.vmem [shape: f32[1,128], index: 5, kind: input, shape index: {}]
  %s6 = inlined_call_operand.vmem [shape: f32[1,128], index: 6, kind: input, shape index: {}]
  %s7 = inlined_call_operand.vmem [shape: f32[1,8,128], index: 7, kind: output, shape index: {}]
  %s8 = sld [smem:[#allocation0]]
  $region38: #{mine_forward.1} parent=0
    _
  %s10 = ssub.s32 1, %s8
  %s11 = scalar_select 0, %s10, %s8
  // Predicated region
  $region2: #{mine_forward.1} parent=0 // pred_check
    _
  $region3: #{mine_forward.1} parent=0 // pred_check_branch
    %13 = sbr.rel (0) target = $region5
  $region4: #{mine_forward.1} parent=0 // pred_region
    _
  $region5: #{mine_forward.1} parent=0 // pred_fallthru
    _
  // Predicated region
  $region6: #{mine_forward.1} parent=0 // pred_check
    _
  $region7: #{mine_forward.1} parent=0 // pred_check_branch
    %15 = sbr.rel (0) target = $region9
  $region8: #{mine_forward.1} parent=0 // pred_region
    _
  $region9: #{mine_forward.1} parent=0 // pred_fallthru
    _
  // Predicated region
  $region10: #{mine_forward.1} parent=0 // pred_check
    _
  $region11: #{mine_forward.1} parent=0 // pred_check_branch
    %17 = sbr.rel (0) target = $region13
  $region12: #{mine_forward.1} parent=0 // pred_region
    _
  $region13: #{mine_forward.1} parent=0 // pred_fallthru
    _
  // Predicated region
  $region14: #{mine_forward.1} parent=0 // pred_check
    _
  $region15: #{mine_forward.1} parent=0 // pred_check_branch
    %19 = sbr.rel (0) target = $region17
  $region16: #{mine_forward.1} parent=0 // pred_region
    _
  $region17: #{mine_forward.1} parent=0 // pred_fallthru
    _
  // Predicated region
  $region18: #{mine_forward.1} parent=0 // pred_check
    _
  $region19: #{mine_forward.1} parent=0 // pred_check_branch
    %21 = sbr.rel (0) target = $region21
  $region20: #{mine_forward.1} parent=0 // pred_region
    _
  $region21: #{mine_forward.1} parent=0 // pred_fallthru
    _
  // Predicated region
  $region22: #{mine_forward.1} parent=0 // pred_check
    _
  $region23: #{mine_forward.1} parent=0 // pred_check_branch
    %23 = sbr.rel (0) target = $region25
  $region24: #{mine_forward.1} parent=0 // pred_region
    _
  $region25: #{mine_forward.1} parent=0 // pred_fallthru
    _
  // Predicated region
  $region26: #{mine_forward.1} parent=0 // pred_check
    _
  $region27: #{mine_forward.1} parent=0 // pred_check_branch
    %25 = sbr.rel (0) target = $region29
  $region28: #{mine_forward.1} parent=0 // pred_region
    _
  $region29: #{mine_forward.1} parent=0 // pred_fallthru
    _
  %v27 = vld [vmem:[%s0] sm:$0xf]
  %v28 = vld [vmem:[%s0 + $0x4] sm:$0xf]
  %v29 = vld [vmem:[%s0 + $0x8] sm:$0xf]
  %v30 = vld [vmem:[%s0 + $0xc] sm:$0xf]
  %v31 = vld [vmem:[%s0 + $0x10] sm:$0xf]
  %v32 = vld [vmem:[%s0 + $0x14] sm:$0xf]
  %v33 = vld [vmem:[%s0 + $0x18] sm:$0xf]
  %v34 = vld [vmem:[%s0 + $0x1c] sm:$0xf]
  %v35 = vld [vmem:[%s1] sm:$0xf]
  %v36 = vld [vmem:[%s1 + $0x4] sm:$0xf]
  %v37 = vld [vmem:[%s1 + $0x8] sm:$0xf]
  %v38 = vld [vmem:[%s1 + $0xc] sm:$0xf]
  %v39 = vld [vmem:[%s1 + $0x10] sm:$0xf]
  %v40 = vld [vmem:[%s1 + $0x14] sm:$0xf]
  %v41 = vld [vmem:[%s1 + $0x18] sm:$0xf]
  %v42 = vld [vmem:[%s1 + $0x1c] sm:$0xf]
  %v51 = vunpack.c.l.b16 %v27
  %v52 = vunpack.c.l.b16 %v28
  %v53 = vunpack.c.l.b16 %v29
  %v54 = vunpack.c.l.b16 %v30
  %v55 = vunpack.c.l.b16 %v31
  %v56 = vunpack.c.l.b16 %v32
  %v57 = vunpack.c.l.b16 %v33
  %v58 = vunpack.c.l.b16 %v34
  %v59 = vpack.c.b16 %v52, %v51
  %v60 = vpack.c.b16 %v54, %v53
  %v61 = vpack.c.b16 %v56, %v55
  %v62 = vpack.c.b16 %v58, %v57
  %v71 = vunpack.c.l.b16 %v35
  %v72 = vunpack.c.l.b16 %v36
  %v73 = vunpack.c.l.b16 %v37
  %v74 = vunpack.c.l.b16 %v38
  %v75 = vunpack.c.l.b16 %v39
  %v76 = vunpack.c.l.b16 %v40
  %v77 = vunpack.c.l.b16 %v41
  %v78 = vunpack.c.l.b16 %v42
  %v79 = vpack.c.b16 %v72, %v71
  %v80 = vpack.c.b16 %v74, %v73
  %v81 = vpack.c.b16 %v76, %v75
  %v82 = vpack.c.b16 %v78, %v77
  %v83 = vld [vmem:[%s2] sm:$0xff]
  %v84 = vld [vmem:[%s2 + $0x8] sm:$0xff]
  %v85 = vld [vmem:[%s2 + $0x10] sm:$0xff]
  %v86 = vld [vmem:[%s2 + $0x18] sm:$0xff]
  %v87 = vld [vmem:[%s3] sm:$0x3]
  %v89 = vperm.slane %v87, 0
  %v90 = vperm.slane %v87, 1
  %v97 = vunpack.c.l.b16 %v83
  %v98 = vunpack.c.h.b16 %v83
  %v99 = vunpack.c.l.b16 %v84
  %v100 = vunpack.c.h.b16 %v84
  %v101 = vunpack.c.l.b16 %v85
  %v102 = vunpack.c.h.b16 %v85
  %v103 = vunpack.c.l.b16 %v86
  %v104 = vunpack.c.h.b16 %v86
  %v105 = vpack.c.b16 %v99, %v97
  %v106 = vpack.c.b16 %v100, %v98
  %v107 = vpack.c.b16 %v103, %v101
  %v108 = vpack.c.b16 %v104, %v102
  %vm113 = vcmask 261120
  %v115 = vsel %vm113, %v59, 0
  %v118 = vsel %vm113, %v60, 0
  %v121 = vsel %vm113, %v61, 0
  %v124 = vsel %vm113, %v62, 0
  %v127 = vsel %vm113, %v79, 0
  %v130 = vsel %vm113, %v80, 0
  %v133 = vsel %vm113, %v81, 0
  %v136 = vsel %vm113, %v82, 0
  %138 = vmatpush.bf16.msra.mxu0 0
  %139 = vmatpush.bf16.msra.mxu0 0
  %140 = vmatpush.bf16.msra.mxu0 0
  %141 = vmatpush.bf16.msra.mxu0 0
  %142 = vmatpush.bf16.msra.mxu0 0
  %143 = vmatpush.bf16.msra.mxu0 0
  %144 = vmatpush.bf16.msra.mxu0 %v107
  %145 = vmatpush.bf16.msra.mxu0 %v105
  %146 = vmatmul.bf16.gmra.mxu0 %v115
  %v147 = vpop.f32.mrf.mxu0
  %v148 = vadd.f32 %v89, %v147
  %v149 = vpop.f32.mrf.mxu0
  %v150 = vadd.f32 %v89, %v149
  %151 = vmatmul.bf16.gmra.mxu0 %v118
  %v152 = vpop.f32.mrf.mxu0
  %v153 = vadd.f32 %v89, %v152
  %v154 = vpop.f32.mrf.mxu0
  %v155 = vadd.f32 %v89, %v154
  %156 = vmatmul.bf16.gmra.mxu0 %v121
  %v157 = vpop.f32.mrf.mxu0
  %v158 = vadd.f32 %v89, %v157
  %v159 = vpop.f32.mrf.mxu0
  %v160 = vadd.f32 %v89, %v159
  %161 = vmatmul.bf16.gmra.mxu0 %v124
  %v162 = vpop.f32.mrf.mxu0
  %v163 = vadd.f32 %v89, %v162
  %v164 = vpop.f32.mrf.mxu0
  %v165 = vadd.f32 %v89, %v164
  %166 = vmatmul.bf16.gmra.mxu0 %v127
  %v167 = vpop.f32.mrf.mxu0
  %v168 = vadd.f32 %v89, %v167
  %v169 = vpop.f32.mrf.mxu0
  %v170 = vadd.f32 %v89, %v169
  %171 = vmatmul.bf16.gmra.mxu0 %v130
  %v172 = vpop.f32.mrf.mxu0
  %v173 = vadd.f32 %v89, %v172
  %v174 = vpop.f32.mrf.mxu0
  %v175 = vadd.f32 %v89, %v174
  %176 = vmatmul.bf16.gmra.mxu0 %v133
  %v177 = vpop.f32.mrf.mxu0
  %v178 = vadd.f32 %v89, %v177
  %v179 = vpop.f32.mrf.mxu0
  %v180 = vadd.f32 %v89, %v179
  %181 = vmatmul.bf16.gmra.mxu0 %v136
  %v182 = vpop.f32.mrf.mxu0
  %v183 = vadd.f32 %v89, %v182
  %v184 = vpop.f32.mrf.mxu0
  %v185 = vadd.f32 %v89, %v184
  %186 = vdwg.mxu0
  %187 = vmatpush.bf16.msra.mxu0 0
  %188 = vmatpush.bf16.msra.mxu0 0
  %189 = vmatpush.bf16.msra.mxu0 0
  %190 = vmatpush.bf16.msra.mxu0 0
  %191 = vmatpush.bf16.msra.mxu0 0
  %192 = vmatpush.bf16.msra.mxu0 0
  %193 = vmatpush.bf16.msra.mxu0 %v108
  %194 = vmatpush.bf16.msra.mxu0 %v106
  %195 = vmatmul.bf16.gmra.mxu0 %v115
  %v196 = vpop.f32.mrf.mxu0
  %v197 = vadd.f32 %v90, %v196
  %v198 = vpop.f32.mrf.mxu0
  %v199 = vadd.f32 %v90, %v198
  %200 = vmatmul.bf16.gmra.mxu0 %v118
  %v201 = vpop.f32.mrf.mxu0
  %v202 = vadd.f32 %v90, %v201
  %v203 = vpop.f32.mrf.mxu0
  %v204 = vadd.f32 %v90, %v203
  %205 = vmatmul.bf16.gmra.mxu0 %v121
  %v206 = vpop.f32.mrf.mxu0
  %v207 = vadd.f32 %v90, %v206
  %v208 = vpop.f32.mrf.mxu0
  %v209 = vadd.f32 %v90, %v208
  %210 = vmatmul.bf16.gmra.mxu0 %v124
  %v211 = vpop.f32.mrf.mxu0
  %v212 = vadd.f32 %v90, %v211
  %v213 = vpop.f32.mrf.mxu0
  %v214 = vadd.f32 %v90, %v213
  %215 = vmatmul.bf16.gmra.mxu0 %v127
  %v216 = vpop.f32.mrf.mxu0
  %v217 = vadd.f32 %v90, %v216
  %v218 = vpop.f32.mrf.mxu0
  %v219 = vadd.f32 %v90, %v218
  %220 = vmatmul.bf16.gmra.mxu0 %v130
  %v221 = vpop.f32.mrf.mxu0
  %v222 = vadd.f32 %v90, %v221
  %v223 = vpop.f32.mrf.mxu0
  %v224 = vadd.f32 %v90, %v223
  %225 = vmatmul.bf16.gmra.mxu0 %v133
  %v226 = vpop.f32.mrf.mxu0
  %v227 = vadd.f32 %v90, %v226
  %v228 = vpop.f32.mrf.mxu0
  %v229 = vadd.f32 %v90, %v228
  %230 = vmatmul.bf16.gmra.mxu0 %v136
  %v231 = vpop.f32.mrf.mxu0
  %v232 = vadd.f32 %v90, %v231
  %v233 = vpop.f32.mrf.mxu0
  %v234 = vadd.f32 %v90, %v233
  %235 = vdwg.mxu0
  %vm236 = vcmp.gt.f32.partialorder %v148, 0.0
  %vm237 = vcmp.gt.f32.partialorder %v197, 0.0
  %vm238 = vcmp.gt.f32.partialorder %v150, 0.0
  %vm239 = vcmp.gt.f32.partialorder %v199, 0.0
  %vm240 = vcmp.gt.f32.partialorder %v153, 0.0
  %vm241 = vcmp.gt.f32.partialorder %v202, 0.0
  %vm242 = vcmp.gt.f32.partialorder %v155, 0.0
  %vm243 = vcmp.gt.f32.partialorder %v204, 0.0
  %vm244 = vcmp.gt.f32.partialorder %v158, 0.0
  %vm245 = vcmp.gt.f32.partialorder %v207, 0.0
  %vm246 = vcmp.gt.f32.partialorder %v160, 0.0
  %vm247 = vcmp.gt.f32.partialorder %v209, 0.0
  %vm248 = vcmp.gt.f32.partialorder %v163, 0.0
  %vm249 = vcmp.gt.f32.partialorder %v212, 0.0
  %vm250 = vcmp.gt.f32.partialorder %v165, 0.0
  %vm251 = vcmp.gt.f32.partialorder %v214, 0.0
  %vm252 = vcmp.gt.f32.partialorder %v168, 0.0
  %vm253 = vcmp.gt.f32.partialorder %v217, 0.0
  %vm254 = vcmp.gt.f32.partialorder %v170, 0.0
  %vm255 = vcmp.gt.f32.partialorder %v219, 0.0
  %vm256 = vcmp.gt.f32.partialorder %v173, 0.0
  %vm257 = vcmp.gt.f32.partialorder %v222, 0.0
  %vm258 = vcmp.gt.f32.partialorder %v175, 0.0
  %vm259 = vcmp.gt.f32.partialorder %v224, 0.0
  %vm260 = vcmp.gt.f32.partialorder %v178, 0.0
  %vm261 = vcmp.gt.f32.partialorder %v227, 0.0
  %vm262 = vcmp.gt.f32.partialorder %v180, 0.0
  %vm263 = vcmp.gt.f32.partialorder %v229, 0.0
  %vm264 = vcmp.gt.f32.partialorder %v183, 0.0
  %vm265 = vcmp.gt.f32.partialorder %v232, 0.0
  %vm266 = vcmp.gt.f32.partialorder %v185, 0.0
  %vm267 = vcmp.gt.f32.partialorder %v234, 0.0
  %v268 = vmin.f32 %v148, 0.0
  %v269 = vmin.f32 %v197, 0.0
  %v270 = vmin.f32 %v150, 0.0
  %v271 = vmin.f32 %v199, 0.0
  %v272 = vmin.f32 %v153, 0.0
  %v273 = vmin.f32 %v202, 0.0
  %v274 = vmin.f32 %v155, 0.0
  %v275 = vmin.f32 %v204, 0.0
  %v276 = vmin.f32 %v158, 0.0
  %v277 = vmin.f32 %v207, 0.0
  %v278 = vmin.f32 %v160, 0.0
  %v279 = vmin.f32 %v209, 0.0
  %v280 = vmin.f32 %v163, 0.0
  %v281 = vmin.f32 %v212, 0.0
  %v282 = vmin.f32 %v165, 0.0
  %v283 = vmin.f32 %v214, 0.0
  %v284 = vmin.f32 %v168, 0.0
  %v285 = vmin.f32 %v217, 0.0
  %v286 = vmin.f32 %v170, 0.0
  %v287 = vmin.f32 %v219, 0.0
  %v288 = vmin.f32 %v173, 0.0
  %v289 = vmin.f32 %v222, 0.0
  %v290 = vmin.f32 %v175, 0.0
  %v291 = vmin.f32 %v224, 0.0
  %v292 = vmin.f32 %v178, 0.0
  %v293 = vmin.f32 %v227, 0.0
  %v294 = vmin.f32 %v180, 0.0
  %v295 = vmin.f32 %v229, 0.0
  %v296 = vmin.f32 %v183, 0.0
  %v297 = vmin.f32 %v232, 0.0
  %v298 = vmin.f32 %v185, 0.0
  %v299 = vmin.f32 %v234, 0.0
  %v300 = vmul.f32 %v268, 1.442695
  %v301 = vpow.pop %v300
  %v302 = vmul.f32 %v269, 1.442695
  %v303 = vpow.pop %v302
  %v304 = vmul.f32 %v270, 1.442695
  %v305 = vpow.pop %v304
  %v306 = vmul.f32 %v271, 1.442695
  %v307 = vpow.pop %v306
  %v308 = vmul.f32 %v272, 1.442695
  %v309 = vpow.pop %v308
  %v310 = vmul.f32 %v273, 1.442695
  %v311 = vpow.pop %v310
  %v312 = vmul.f32 %v274, 1.442695
  %v313 = vpow.pop %v312
  %v314 = vmul.f32 %v275, 1.442695
  %v315 = vpow.pop %v314
  %v316 = vmul.f32 %v276, 1.442695
  %v317 = vpow.pop %v316
  %v318 = vmul.f32 %v277, 1.442695
  %v319 = vpow.pop %v318
  %v320 = vmul.f32 %v278, 1.442695
  %v321 = vpow.pop %v320
  %v322 = vmul.f32 %v279, 1.442695
  %v323 = vpow.pop %v322
  %v324 = vmul.f32 %v280, 1.442695
  %v325 = vpow.pop %v324
  %v326 = vmul.f32 %v281, 1.442695
  %v327 = vpow.pop %v326
  %v328 = vmul.f32 %v282, 1.442695
  %v329 = vpow.pop %v328
  %v330 = vmul.f32 %v283, 1.442695
  %v331 = vpow.pop %v330
  %v332 = vmul.f32 %v284, 1.442695
  %v333 = vpow.pop %v332
  %v334 = vmul.f32 %v285, 1.442695
  %v335 = vpow.pop %v334
  %v336 = vmul.f32 %v286, 1.442695
  %v337 = vpow.pop %v336
  %v338 = vmul.f32 %v287, 1.442695
  %v339 = vpow.pop %v338
  %v340 = vmul.f32 %v288, 1.442695
  %v341 = vpow.pop %v340
  %v342 = vmul.f32 %v289, 1.442695
  %v343 = vpow.pop %v342
  %v344 = vmul.f32 %v290, 1.442695
  %v345 = vpow.pop %v344
  %v346 = vmul.f32 %v291, 1.442695
  %v347 = vpow.pop %v346
  %v348 = vmul.f32 %v292, 1.442695
  %v349 = vpow.pop %v348
  %v350 = vmul.f32 %v293, 1.442695
  %v351 = vpow.pop %v350
  %v352 = vmul.f32 %v294, 1.442695
  %v353 = vpow.pop %v352
  %v354 = vmul.f32 %v295, 1.442695
  %v355 = vpow.pop %v354
  %v356 = vmul.f32 %v296, 1.442695
  %v357 = vpow.pop %v356
  %v358 = vmul.f32 %v297, 1.442695
  %v359 = vpow.pop %v358
  %v360 = vmul.f32 %v298, 1.442695
  %v361 = vpow.pop %v360
  %v362 = vmul.f32 %v299, 1.442695
  %v363 = vpow.pop %v362
  %v364 = vsub.f32 %v301, 1.0
  %v365 = vsub.f32 %v303, 1.0
  %v366 = vsub.f32 %v305, 1.0
  %v367 = vsub.f32 %v307, 1.0
  %v368 = vsub.f32 %v309, 1.0
  %v369 = vsub.f32 %v311, 1.0
  %v370 = vsub.f32 %v313, 1.0
  %v371 = vsub.f32 %v315, 1.0
  %v372 = vsub.f32 %v317, 1.0
  %v373 = vsub.f32 %v319, 1.0
  %v374 = vsub.f32 %v321, 1.0
  %v375 = vsub.f32 %v323, 1.0
  %v376 = vsub.f32 %v325, 1.0
  %v377 = vsub.f32 %v327, 1.0
  %v378 = vsub.f32 %v329, 1.0
  %v379 = vsub.f32 %v331, 1.0
  %v380 = vsub.f32 %v333, 1.0
  %v381 = vsub.f32 %v335, 1.0
  %v382 = vsub.f32 %v337, 1.0
  %v383 = vsub.f32 %v339, 1.0
  %v384 = vsub.f32 %v341, 1.0
  %v385 = vsub.f32 %v343, 1.0
  %v386 = vsub.f32 %v345, 1.0
  %v387 = vsub.f32 %v347, 1.0
  %v388 = vsub.f32 %v349, 1.0
  %v389 = vsub.f32 %v351, 1.0
  %v390 = vsub.f32 %v353, 1.0
  %v391 = vsub.f32 %v355, 1.0
  %v392 = vsub.f32 %v357, 1.0
  %v393 = vsub.f32 %v359, 1.0
  %v394 = vsub.f32 %v361, 1.0
  %v395 = vsub.f32 %v363, 1.0
  %v396 = vsel %vm236, %v148, %v364
  %v397 = vsel %vm237, %v197, %v365
  %v398 = vsel %vm238, %v150, %v366
  %v399 = vsel %vm239, %v199, %v367
  %v400 = vsel %vm240, %v153, %v368
  %v401 = vsel %vm241, %v202, %v369
  %v402 = vsel %vm242, %v155, %v370
  %v403 = vsel %vm243, %v204, %v371
  %v404 = vsel %vm244, %v158, %v372
  %v405 = vsel %vm245, %v207, %v373
  %v406 = vsel %vm246, %v160, %v374
  %v407 = vsel %vm247, %v209, %v375
  %v408 = vsel %vm248, %v163, %v376
  %v409 = vsel %vm249, %v212, %v377
  %v410 = vsel %vm250, %v165, %v378
  %v411 = vsel %vm251, %v214, %v379
  %v412 = vsel %vm252, %v168, %v380
  %v413 = vsel %vm253, %v217, %v381
  %v414 = vsel %vm254, %v170, %v382
  %v415 = vsel %vm255, %v219, %v383
  %v416 = vsel %vm256, %v173, %v384
  %v417 = vsel %vm257, %v222, %v385
  %v418 = vsel %vm258, %v175, %v386
  %v419 = vsel %vm259, %v224, %v387
  %v420 = vsel %vm260, %v178, %v388
  %v421 = vsel %vm261, %v227, %v389
  %v422 = vsel %vm262, %v180, %v390
  %v423 = vsel %vm263, %v229, %v391
  %v424 = vsel %vm264, %v183, %v392
  %v425 = vsel %vm265, %v232, %v393
  %v426 = vsel %vm266, %v185, %v394
  %v427 = vsel %vm267, %v234, %v395
  %v428 = vpack.c.bf16 %v398, %v396
  %v429 = vpack.c.bf16 %v399, %v397
  %v430 = vpack.c.bf16 %v402, %v400
  %v431 = vpack.c.bf16 %v403, %v401
  %v432 = vpack.c.bf16 %v406, %v404
  %v433 = vpack.c.bf16 %v407, %v405
  %v434 = vpack.c.bf16 %v410, %v408
  %v435 = vpack.c.bf16 %v411, %v409
  %v436 = vpack.c.bf16 %v414, %v412
  %v437 = vpack.c.bf16 %v415, %v413
  %v438 = vpack.c.bf16 %v418, %v416
  %v439 = vpack.c.bf16 %v419, %v417
  %v440 = vpack.c.bf16 %v422, %v420
  %v441 = vpack.c.bf16 %v423, %v421
  %v442 = vpack.c.bf16 %v426, %v424
  %v443 = vpack.c.bf16 %v427, %v425
  %v444 = vld [vmem:[%s4] sm:$0xf]
  %v445 = vld [vmem:[%s4 + $0x4] sm:$0xf]
  %v446 = vld [vmem:[%s4 + $0x8] sm:$0xf]
  %v447 = vld [vmem:[%s4 + $0xc] sm:$0xf]
  %v448 = vld [vmem:[%s4 + $0x10] sm:$0xf]
  %v449 = vld [vmem:[%s4 + $0x14] sm:$0xf]
  %v450 = vld [vmem:[%s4 + $0x18] sm:$0xf]
  %v451 = vld [vmem:[%s4 + $0x1c] sm:$0xf]
  %v452 = vld [vmem:[%s4 + $0x20] sm:$0xf]
  %v453 = vld [vmem:[%s4 + $0x24] sm:$0xf]
  %v454 = vld [vmem:[%s4 + $0x28] sm:$0xf]
  %v455 = vld [vmem:[%s4 + $0x2c] sm:$0xf]
  %v456 = vld [vmem:[%s4 + $0x30] sm:$0xf]
  %v457 = vld [vmem:[%s4 + $0x34] sm:$0xf]
  %v458 = vld [vmem:[%s4 + $0x38] sm:$0xf]
  %v459 = vld [vmem:[%s4 + $0x3c] sm:$0xf]
  %v460 = vld [vmem:[%s4 + $0x40] sm:$0xf]
  %v461 = vld [vmem:[%s4 + $0x44] sm:$0xf]
  %v462 = vld [vmem:[%s4 + $0x48] sm:$0xf]
  %v463 = vld [vmem:[%s4 + $0x4c] sm:$0xf]
  %v464 = vld [vmem:[%s4 + $0x50] sm:$0xf]
  %v465 = vld [vmem:[%s4 + $0x54] sm:$0xf]
  %v466 = vld [vmem:[%s4 + $0x58] sm:$0xf]
  %v467 = vld [vmem:[%s4 + $0x5c] sm:$0xf]
  %v468 = vld [vmem:[%s4 + $0x60] sm:$0xf]
  %v469 = vld [vmem:[%s4 + $0x64] sm:$0xf]
  %v470 = vld [vmem:[%s4 + $0x68] sm:$0xf]
  %v471 = vld [vmem:[%s4 + $0x6c] sm:$0xf]
  %v472 = vld [vmem:[%s4 + $0x70] sm:$0xf]
  %v473 = vld [vmem:[%s4 + $0x74] sm:$0xf]
  %v474 = vld [vmem:[%s4 + $0x78] sm:$0xf]
  %v475 = vld [vmem:[%s4 + $0x7c] sm:$0xf]
  %v476 = vld [vmem:[%s5] sm:$0x1]
  %v478 = vperm.slane %v476, 0
  %v512 = vunpack.c.l.b16 %v444
  %v513 = vunpack.c.l.b16 %v445
  %v514 = vunpack.c.l.b16 %v446
  %v515 = vunpack.c.l.b16 %v447
  %v516 = vunpack.c.l.b16 %v448
  %v517 = vunpack.c.l.b16 %v449
  %v518 = vunpack.c.l.b16 %v450
  %v519 = vunpack.c.l.b16 %v451
  %v520 = vunpack.c.l.b16 %v452
  %v521 = vunpack.c.l.b16 %v453
  %v522 = vunpack.c.l.b16 %v454
  %v523 = vunpack.c.l.b16 %v455
  %v524 = vunpack.c.l.b16 %v456
  %v525 = vunpack.c.l.b16 %v457
  %v526 = vunpack.c.l.b16 %v458
  %v527 = vunpack.c.l.b16 %v459
  %v528 = vunpack.c.l.b16 %v460
  %v529 = vunpack.c.l.b16 %v461
  %v530 = vunpack.c.l.b16 %v462
  %v531 = vunpack.c.l.b16 %v463
  %v532 = vunpack.c.l.b16 %v464
  %v533 = vunpack.c.l.b16 %v465
  %v534 = vunpack.c.l.b16 %v466
  %v535 = vunpack.c.l.b16 %v467
  %v536 = vunpack.c.l.b16 %v468
  %v537 = vunpack.c.l.b16 %v469
  %v538 = vunpack.c.l.b16 %v470
  %v539 = vunpack.c.l.b16 %v471
  %v540 = vunpack.c.l.b16 %v472
  %v541 = vunpack.c.l.b16 %v473
  %v542 = vunpack.c.l.b16 %v474
  %v543 = vunpack.c.l.b16 %v475
  %v544 = vpack.c.b16 %v513, %v512
  %v545 = vpack.c.b16 %v515, %v514
  %v546 = vpack.c.b16 %v517, %v516
  %v547 = vpack.c.b16 %v519, %v518
  %v548 = vpack.c.b16 %v521, %v520
  %v549 = vpack.c.b16 %v523, %v522
  %v550 = vpack.c.b16 %v525, %v524
  %v551 = vpack.c.b16 %v527, %v526
  %v552 = vpack.c.b16 %v529, %v528
  %v553 = vpack.c.b16 %v531, %v530
  %v554 = vpack.c.b16 %v533, %v532
  %v555 = vpack.c.b16 %v535, %v534
  %v556 = vpack.c.b16 %v537, %v536
  %v557 = vpack.c.b16 %v539, %v538
  %v558 = vpack.c.b16 %v541, %v540
  %v559 = vpack.c.b16 %v543, %v542
  %576 = vmatpush.bf16.msra.mxu0 %v551
  %577 = vmatpush.bf16.msra.mxu0 %v550
  %578 = vmatpush.bf16.msra.mxu0 %v549
  %579 = vmatpush.bf16.msra.mxu0 %v548
  %580 = vmatpush.bf16.msra.mxu0 %v547
  %581 = vmatpush.bf16.msra.mxu0 %v546
  %582 = vmatpush.bf16.msra.mxu0 %v545
  %583 = vmatpush.bf16.msra.mxu0 %v544
  %584 = vmatmul.bf16.gmra.mxu0 %v428
  %v585 = vpop.f32.mrf.mxu0
  %v586 = vadd.f32 %v478, %v585
  %v587 = vpop.f32.mrf.mxu0
  %v588 = vadd.f32 %v478, %v587
  %589 = vmatmul.bf16.gmra.mxu0 %v430
  %v590 = vpop.f32.mrf.mxu0
  %v591 = vadd.f32 %v478, %v590
  %v592 = vpop.f32.mrf.mxu0
  %v593 = vadd.f32 %v478, %v592
  %594 = vmatmul.bf16.gmra.mxu0 %v432
  %v595 = vpop.f32.mrf.mxu0
  %v596 = vadd.f32 %v478, %v595
  %v597 = vpop.f32.mrf.mxu0
  %v598 = vadd.f32 %v478, %v597
  %599 = vmatmul.bf16.gmra.mxu0 %v434
  %v600 = vpop.f32.mrf.mxu0
  %v601 = vadd.f32 %v478, %v600
  %v602 = vpop.f32.mrf.mxu0
  %v603 = vadd.f32 %v478, %v602
  %604 = vmatmul.bf16.gmra.mxu0 %v436
  %v605 = vpop.f32.mrf.mxu0
  %v606 = vadd.f32 %v478, %v605
  %v607 = vpop.f32.mrf.mxu0
  %v608 = vadd.f32 %v478, %v607
  %609 = vmatmul.bf16.gmra.mxu0 %v438
  %v610 = vpop.f32.mrf.mxu0
  %v611 = vadd.f32 %v478, %v610
  %v612 = vpop.f32.mrf.mxu0
  %v613 = vadd.f32 %v478, %v612
  %614 = vmatmul.bf16.gmra.mxu0 %v440
  %v615 = vpop.f32.mrf.mxu0
  %v616 = vadd.f32 %v478, %v615
  %v617 = vpop.f32.mrf.mxu0
  %v618 = vadd.f32 %v478, %v617
  %619 = vmatmul.bf16.gmra.mxu0 %v442
  %v620 = vpop.f32.mrf.mxu0
  %v621 = vadd.f32 %v478, %v620
  %v622 = vpop.f32.mrf.mxu0
  %v623 = vadd.f32 %v478, %v622
  %624 = vdwg.mxu0
  %625 = vmatpush.bf16.msra.mxu0 %v559
  %626 = vmatpush.bf16.msra.mxu0 %v558
  %627 = vmatpush.bf16.msra.mxu0 %v557
  %628 = vmatpush.bf16.msra.mxu0 %v556
  %629 = vmatpush.bf16.msra.mxu0 %v555
  %630 = vmatpush.bf16.msra.mxu0 %v554
  %631 = vmatpush.bf16.msra.mxu0 %v553
  %632 = vmatpush.bf16.msra.mxu0 %v552
  %633 = vmatmul.bf16.gmra.mxu0 %v429
  %v634 = vpop.f32.mrf.mxu0
  %v635 = vadd.f32 %v586, %v634
  %v636 = vpop.f32.mrf.mxu0
  %v637 = vadd.f32 %v588, %v636
  %638 = vmatmul.bf16.gmra.mxu0 %v431
  %v639 = vpop.f32.mrf.mxu0
  %v640 = vadd.f32 %v591, %v639
  %v641 = vpop.f32.mrf.mxu0
  %v642 = vadd.f32 %v593, %v641
  %643 = vmatmul.bf16.gmra.mxu0 %v433
  %v644 = vpop.f32.mrf.mxu0
  %v645 = vadd.f32 %v596, %v644
  %v646 = vpop.f32.mrf.mxu0
  %v647 = vadd.f32 %v598, %v646
  %648 = vmatmul.bf16.gmra.mxu0 %v435
  %v649 = vpop.f32.mrf.mxu0
  %v650 = vadd.f32 %v601, %v649
  %v651 = vpop.f32.mrf.mxu0
  %v652 = vadd.f32 %v603, %v651
  %653 = vmatmul.bf16.gmra.mxu0 %v437
  %v654 = vpop.f32.mrf.mxu0
  %v655 = vadd.f32 %v606, %v654
  %v656 = vpop.f32.mrf.mxu0
  %v657 = vadd.f32 %v608, %v656
  %658 = vmatmul.bf16.gmra.mxu0 %v439
  %v659 = vpop.f32.mrf.mxu0
  %v660 = vadd.f32 %v611, %v659
  %v661 = vpop.f32.mrf.mxu0
  %v662 = vadd.f32 %v613, %v661
  %663 = vmatmul.bf16.gmra.mxu0 %v441
  %v664 = vpop.f32.mrf.mxu0
  %v665 = vadd.f32 %v616, %v664
  %v666 = vpop.f32.mrf.mxu0
  %v667 = vadd.f32 %v618, %v666
  %668 = vmatmul.bf16.gmra.mxu0 %v443
  %v669 = vpop.f32.mrf.mxu0
  %v670 = vadd.f32 %v621, %v669
  %v671 = vpop.f32.mrf.mxu0
  %v672 = vadd.f32 %v623, %v671
  %673 = vdwg.mxu0
  %vm674 = vcmp.gt.f32.partialorder %v635, 0.0
  %vm675 = vcmp.gt.f32.partialorder %v637, 0.0
  %vm676 = vcmp.gt.f32.partialorder %v640, 0.0
  %vm677 = vcmp.gt.f32.partialorder %v642, 0.0
  %vm678 = vcmp.gt.f32.partialorder %v645, 0.0
  %vm679 = vcmp.gt.f32.partialorder %v647, 0.0
  %vm680 = vcmp.gt.f32.partialorder %v650, 0.0
  %vm681 = vcmp.gt.f32.partialorder %v652, 0.0
  %vm682 = vcmp.gt.f32.partialorder %v655, 0.0
  %vm683 = vcmp.gt.f32.partialorder %v657, 0.0
  %vm684 = vcmp.gt.f32.partialorder %v660, 0.0
  %vm685 = vcmp.gt.f32.partialorder %v662, 0.0
  %vm686 = vcmp.gt.f32.partialorder %v665, 0.0
  %vm687 = vcmp.gt.f32.partialorder %v667, 0.0
  %vm688 = vcmp.gt.f32.partialorder %v670, 0.0
  %vm689 = vcmp.gt.f32.partialorder %v672, 0.0
  %v690 = vmin.f32 %v635, 0.0
  %v691 = vmin.f32 %v637, 0.0
  %v692 = vmin.f32 %v640, 0.0
  %v693 = vmin.f32 %v642, 0.0
  %v694 = vmin.f32 %v645, 0.0
  %v695 = vmin.f32 %v647, 0.0
  %v696 = vmin.f32 %v650, 0.0
  %v697 = vmin.f32 %v652, 0.0
  %v698 = vmin.f32 %v655, 0.0
  %v699 = vmin.f32 %v657, 0.0
  %v700 = vmin.f32 %v660, 0.0
  %v701 = vmin.f32 %v662, 0.0
  %v702 = vmin.f32 %v665, 0.0
  %v703 = vmin.f32 %v667, 0.0
  %v704 = vmin.f32 %v670, 0.0
  %v705 = vmin.f32 %v672, 0.0
  %v706 = vmul.f32 %v690, 1.442695
  %v707 = vpow.pop %v706
  %v708 = vmul.f32 %v691, 1.442695
  %v709 = vpow.pop %v708
  %v710 = vmul.f32 %v692, 1.442695
  %v711 = vpow.pop %v710
  %v712 = vmul.f32 %v693, 1.442695
  %v713 = vpow.pop %v712
  %v714 = vmul.f32 %v694, 1.442695
  %v715 = vpow.pop %v714
  %v716 = vmul.f32 %v695, 1.442695
  %v717 = vpow.pop %v716
  %v718 = vmul.f32 %v696, 1.442695
  %v719 = vpow.pop %v718
  %v720 = vmul.f32 %v697, 1.442695
  %v721 = vpow.pop %v720
  %v722 = vmul.f32 %v698, 1.442695
  %v723 = vpow.pop %v722
  %v724 = vmul.f32 %v699, 1.442695
  %v725 = vpow.pop %v724
  %v726 = vmul.f32 %v700, 1.442695
  %v727 = vpow.pop %v726
  %v728 = vmul.f32 %v701, 1.442695
  %v729 = vpow.pop %v728
  %v730 = vmul.f32 %v702, 1.442695
  %v731 = vpow.pop %v730
  %v732 = vmul.f32 %v703, 1.442695
  %v733 = vpow.pop %v732
  %v734 = vmul.f32 %v704, 1.442695
  %v735 = vpow.pop %v734
  %v736 = vmul.f32 %v705, 1.442695
  %v737 = vpow.pop %v736
  %v738 = vsub.f32 %v707, 1.0
  %v739 = vsub.f32 %v709, 1.0
  %v740 = vsub.f32 %v711, 1.0
  %v741 = vsub.f32 %v713, 1.0
  %v742 = vsub.f32 %v715, 1.0
  %v743 = vsub.f32 %v717, 1.0
  %v744 = vsub.f32 %v719, 1.0
  %v745 = vsub.f32 %v721, 1.0
  %v746 = vsub.f32 %v723, 1.0
  %v747 = vsub.f32 %v725, 1.0
  %v748 = vsub.f32 %v727, 1.0
  %v749 = vsub.f32 %v729, 1.0
  %v750 = vsub.f32 %v731, 1.0
  %v751 = vsub.f32 %v733, 1.0
  %v752 = vsub.f32 %v735, 1.0
  %v753 = vsub.f32 %v737, 1.0
  %v754 = vsel %vm674, %v635, %v738
  %v755 = vsel %vm675, %v637, %v739
  %v756 = vsel %vm676, %v640, %v740
  %v757 = vsel %vm677, %v642, %v741
  %v758 = vsel %vm678, %v645, %v742
  %v759 = vsel %vm679, %v647, %v743
  %v760 = vsel %vm680, %v650, %v744
  %v761 = vsel %vm681, %v652, %v745
  %v762 = vsel %vm682, %v655, %v746
  %v763 = vsel %vm683, %v657, %v747
  %v764 = vsel %vm684, %v660, %v748
  %v765 = vsel %vm685, %v662, %v749
  %v766 = vsel %vm686, %v665, %v750
  %v767 = vsel %vm687, %v667, %v751
  %v768 = vsel %vm688, %v670, %v752
  %v769 = vsel %vm689, %v672, %v753
  %v770 = vld [vmem:[%s6] sm:$0x1]
  %v772 = vperm.slane %v770, 0
  %v774 = vmul.f32 %v754, %v772
  %v775 = vmul.f32 %v755, %v772
  %v776 = vmul.f32 %v756, %v772
  %v777 = vmul.f32 %v757, %v772
  %v778 = vmul.f32 %v758, %v772
  %v779 = vmul.f32 %v759, %v772
  %v780 = vmul.f32 %v760, %v772
  %v781 = vmul.f32 %v761, %v772
  %v782 = vmul.f32 %v762, %v772
  %v783 = vmul.f32 %v763, %v772
  %v784 = vmul.f32 %v764, %v772
  %v785 = vmul.f32 %v765, %v772
  %v786 = vmul.f32 %v766, %v772
  %v787 = vmul.f32 %v767, %v772
  %v788 = vmul.f32 %v768, %v772
  %v789 = vmul.f32 %v769, %v772
  %790 = vadd.xlane.f32.xlu0 %v774
  %v791 = vpop.xlane.xlu0 %790
  %792 = vadd.xlane.f32.xlu0 %v775
  %v793 = vpop.xlane.xlu0 %792
  %794 = vadd.xlane.f32.xlu0 %v776
  %v795 = vpop.xlane.xlu0 %794
  %796 = vadd.xlane.f32.xlu0 %v777
  %v797 = vpop.xlane.xlu0 %796
  %798 = vadd.xlane.f32.xlu0 %v778
  %v799 = vpop.xlane.xlu0 %798
  %800 = vadd.xlane.f32.xlu0 %v779
  %v801 = vpop.xlane.xlu0 %800
  %802 = vadd.xlane.f32.xlu0 %v780
  %v803 = vpop.xlane.xlu0 %802
  %804 = vadd.xlane.f32.xlu0 %v781
  %v805 = vpop.xlane.xlu0 %804
  %806 = vadd.xlane.f32.xlu0 %v782
  %v807 = vpop.xlane.xlu0 %806
  %808 = vadd.xlane.f32.xlu0 %v783
  %v809 = vpop.xlane.xlu0 %808
  %810 = vadd.xlane.f32.xlu0 %v784
  %v811 = vpop.xlane.xlu0 %810
  %812 = vadd.xlane.f32.xlu0 %v785
  %v813 = vpop.xlane.xlu0 %812
  %814 = vadd.xlane.f32.xlu0 %v786
  %v815 = vpop.xlane.xlu0 %814
  %816 = vadd.xlane.f32.xlu0 %v787
  %v817 = vpop.xlane.xlu0 %816
  %818 = vadd.xlane.f32.xlu0 %v788
  %v819 = vpop.xlane.xlu0 %818
  %820 = vadd.xlane.f32.xlu0 %v789
  %v821 = vpop.xlane.xlu0 %820
  %vm822 = vcmask 7168
  %v823 = vsel %vm822, %v791, 0.0
  %v824 = vsel %vm822, %v793, 0.0
  %v825 = vadd.f32 %v823, %v824
  %v826 = vsel %vm822, %v795, 0.0
  %v827 = vadd.f32 %v825, %v826
  %v828 = vsel %vm822, %v797, 0.0
  %v829 = vadd.f32 %v827, %v828
  %v830 = vsel %vm822, %v799, 0.0
  %v831 = vadd.f32 %v829, %v830
  %v832 = vsel %vm822, %v801, 0.0
  %v833 = vadd.f32 %v831, %v832
  %v834 = vsel %vm822, %v803, 0.0
  %v835 = vadd.f32 %v833, %v834
  %v836 = vsel %vm822, %v805, 0.0
  %v837 = vadd.f32 %v835, %v836
  %838 = vadd.xlane.f32.xlu0 %v837
  %v839 = vpop.xlane.xlu0 %838
  %v840 = vrot.slane %v839, 4
  %v841 = vadd.f32 %v839, %v840
  %v842 = vrot.slane %v841, 2
  %v843 = vadd.f32 %v841, %v842
  %v844 = vrot.slane %v843, 1
  %v845 = vadd.f32 %v843, %v844
  %s846 = vtos %v845
  %v847 = vmax.f32 %v807, %v815
  %v848 = vmax.f32 %v809, %v817
  %v849 = vmax.f32 %v811, %v819
  %v850 = vmax.f32 %v813, %v821
  %v851 = vmax.f32 %v847, %v848
  %v852 = vmax.f32 %v849, %v850
  %v853 = vmax.f32 %v851, %v852
  %v854 = vrot.slane %v853, 4
  %v855 = vmax.f32 %v853, %v854
  %v856 = vrot.slane %v855, 2
  %v857 = vmax.f32 %v855, %v856
  %v858 = vrot.slane %v857, 1
  %v859 = vmax.f32 %v857, %v858
  %s860 = vtos %v859
  %v861 = vstv %s860
  %v862 = vsub.f32 %v807, %v861
  %v863 = vsub.f32 %v809, %v861
  %v864 = vsub.f32 %v811, %v861
  %v865 = vsub.f32 %v813, %v861
  %v866 = vsub.f32 %v815, %v861
  %v867 = vsub.f32 %v817, %v861
  %v868 = vsub.f32 %v819, %v861
  %v869 = vsub.f32 %v821, %v861
  %v870 = vmul.f32 %v862, 1.442695
  %v871 = vpow.pop %v870
  %v872 = vmul.f32 %v863, 1.442695
  %v873 = vpow.pop %v872
  %v874 = vmul.f32 %v864, 1.442695
  %v875 = vpow.pop %v874
  %v876 = vmul.f32 %v865, 1.442695
  %v877 = vpow.pop %v876
  %v878 = vmul.f32 %v866, 1.442695
  %v879 = vpow.pop %v878
  %v880 = vmul.f32 %v867, 1.442695
  %v881 = vpow.pop %v880
  %v882 = vmul.f32 %v868, 1.442695
  %v883 = vpow.pop %v882
  %v884 = vmul.f32 %v869, 1.442695
  %v885 = vpow.pop %v884
  %v886 = vsel %vm822, %v871, 0.0
  %v887 = vsel %vm822, %v873, 0.0
  %v888 = vadd.f32 %v886, %v887
  %v889 = vsel %vm822, %v875, 0.0
  %v890 = vadd.f32 %v888, %v889
  %v891 = vsel %vm822, %v877, 0.0
  %v892 = vadd.f32 %v890, %v891
  %v893 = vsel %vm822, %v879, 0.0
  %v894 = vadd.f32 %v892, %v893
  %v895 = vsel %vm822, %v881, 0.0
  %v896 = vadd.f32 %v894, %v895
  %v897 = vsel %vm822, %v883, 0.0
  %v898 = vadd.f32 %v896, %v897
  %v899 = vsel %vm822, %v885, 0.0
  %v900 = vadd.f32 %v898, %v899
  %901 = vadd.xlane.f32.xlu0 %v900
  %v902 = vpop.xlane.xlu0 %901
  %v903 = vrot.slane %v902, 4
  %v904 = vadd.f32 %v902, %v903
  %v905 = vrot.slane %v904, 2
  %v906 = vadd.f32 %v904, %v905
  %v907 = vrot.slane %v906, 1
  %v908 = vadd.f32 %v906, %v907
  %s909 = vtos %v908
  %v910 = vlaneseq
  %v911 = vand.u32 %v910, 127
  %vm912 = vcmp.eq.s32.totalorder %v911, 0
  %vm913 = vcmp.eq.s32.totalorder %v911, 1
  %vm914 = vcmp.eq.s32.totalorder %v911, 2
  %v915 = vstv %s909
  %v916 = vsel %vm914, %v915, 0.0
  %v917 = vsel %vm913, %v861, %v916
  %v918 = vstv %s846
  %v919 = vsel %vm912, %v918, %v917
  %920 = vst [vmem:[%s7] sm:$0xff] %v919
  // Predicated region
  $region30: #{mine_forward.1} parent=0 // pred_check
    _
  $region31: #{mine_forward.1} parent=0 // pred_check_branch
    %922 = sbr.rel (0) target = $region33
  $region32: #{mine_forward.1} parent=0 // pred_region
    _
  $region33: #{mine_forward.1} parent=0 // pred_fallthru
    _
  // Predicated region
  $region34: #{mine_forward.1} parent=0 // pred_check
    _
  $region35: #{mine_forward.1} parent=0 // pred_check_branch
    %924 = sbr.rel (0) target = $region37
  $region36: #{mine_forward.1} parent=0 // pred_region
    _
  $region37: #{mine_forward.1} parent=0 // pred_fallthru
    _

</llo_original>
